<compile_context>
chip_gen: v7x
topology: tpu7x:2x2x1
jax: 0.10.0
libtpu: 0.0.40
codegen_flags: <defaults>
</compile_context>

<pallas_src>
import functools
import math

import jax
import jax.numpy as jnp
from jax import lax
from jax.experimental import pallas as pl
from jax.experimental.pallas import tpu as pltpu

EPS = 1e-5
_MIB = 1024 * 1024


def _ln_stats(x):
    """Single-pass row statistics: (mean, rsqrt(var + eps)) in f32."""
    mean = jnp.mean(x, axis=-1, keepdims=True)
    ex2 = jnp.mean(x * x, axis=-1, keepdims=True)
    # E[x^2] - mean^2 can cancel slightly negative in f32 -> clamp before rsqrt.
    var = jnp.maximum(ex2 - mean * mean, 0.0)
    return mean, lax.rsqrt(var + EPS)


def _layernorm_bias_kernel(x_ref, w_ref, b_ref, o_ref):
    # x_ref: (block_rows, hidden); w_ref / b_ref: (1, hidden)
    x = x_ref[...].astype(jnp.float32)
    mean, inv = _ln_stats(x)
    y = (x - mean) * inv * w_ref[...].astype(jnp.float32) + b_ref[...].astype(jnp.float32)
    o_ref[...] = y.astype(o_ref.dtype)


def _layernorm_nobias_kernel(x_ref, w_ref, o_ref):
    x = x_ref[...].astype(jnp.float32)
    mean, inv = _ln_stats(x)
    o_ref[...] = ((x - mean) * inv * w_ref[...].astype(jnp.float32)).astype(o_ref.dtype)


def _vmem_capacity_bytes():
    """Physical VMEM per TensorCore; fall back to the smallest current part."""
    try:
        cap = int(pltpu.get_tpu_info().vmem_capacity_bytes)
        if cap > 0:
            return cap
    except Exception:
        pass
    return 64 * _MIB  # v7x-sized fallback: safe (if conservative) on v5e/v6e


def _pick_block_rows(rows, hidden, itemsize, vmem_cap):
    """Byte-budgeted, sublane-aligned row tile (no fixed row-count cap)."""
    tile_budget = int(vmem_cap * 0.40)
    # Per-row VMEM charge: double-buffered input + output tiles plus ~3 f32
    # temporaries per element for the single-pass body (conservative so the
    # same sizing logic stays inside v7x's 64 MiB).
    bytes_per_row = hidden * (2 * itemsize + 2 * itemsize + 3 * 4)
    br = tile_budget // max(bytes_per_row, 1)
    if br >= rows:
        return rows  # block shape == full array dim is always legal
    # Multiple of 32 satisfies sublane tiling for f32 / bf16 / int8 / fp8.
    return max(32, (br // 32) * 32)


@functools.partial(jax.jit, static_argnames=("block_rows",))
def layer_norm(x, weight, bias=None, *, block_rows=None):
    """LayerNorm over the last dim of x, matching F.layer_norm(..., eps=1e-5)."""
    orig_shape = x.shape
    hidden = orig_shape[-1]
    rows = math.prod(orig_shape[:-1])

    x2 = x.reshape(rows, hidden)
    w2 = weight.reshape(1, hidden)

    itemsize = jnp.dtype(x.dtype).itemsize
    vmem_cap = _vmem_capacity_bytes()
    br = block_rows if block_rows is not None else _pick_block_rows(
        rows, hidden, itemsize, vmem_cap)
    br = int(min(br, rows))
    grid = (pl.cdiv(rows, br),)  # ragged last block is masked by Pallas

    cparams = pltpu.CompilerParams(
        # Rows are independent; lets multi-TensorCore parts shard the row axis.
        dimension_semantics=("parallel",),
        vmem_limit_bytes=int(vmem_cap * 0.75),
    )
    # Streaming, memory-bound op: ~9 flop/element, one rsqrt per row, in + out
    # HBM traffic.  Advisory only (helps XLA overlap the custom call).
    cost = pl.CostEstimate(
        flops=9 * rows * hidden,
        transcendentals=rows,
        bytes_accessed=2 * rows * hidden * itemsize + 2 * hidden * 4,
    )

    x_spec = pl.BlockSpec((br, hidden), lambda i: (i, 0))
    wb_spec = pl.BlockSpec((1, hidden), lambda i: (0, 0))
    out_spec = pl.BlockSpec((br, hidden), lambda i: (i, 0))
    out_shape = jax.ShapeDtypeStruct((rows, hidden), x.dtype)

    if bias is None:
        kernel = _layernorm_nobias_kernel
        in_specs = [x_spec, wb_spec]
        operands = (x2, w2)
    else:
        kernel = _layernorm_bias_kernel
        in_specs = [x_spec, wb_spec, wb_spec]
        operands = (x2, w2, bias.reshape(1, hidden))

    out = pl.pallas_call(
        kernel,
        out_shape=out_shape,
        grid_spec=pltpu.PrefetchScalarGridSpec(
            num_scalar_prefetch=0,
            grid=grid,
            in_specs=in_specs,
            out_specs=out_spec,
        ),
        compiler_params=cparams,
        cost_estimate=cost,
    )(*operands)

    return out.reshape(orig_shape)


def _reference_layer_norm(x, weight, bias):
    x32 = x.astype(jnp.float32)
    mean = jnp.mean(x32, axis=-1, keepdims=True)
    var = jnp.mean((x32 - mean) ** 2, axis=-1, keepdims=True)
    y = (x32 - mean) / jnp.sqrt(var + EPS) * weight
    if bias is not None:
        y = y + bias
    return y.astype(x.dtype)


if __name__ == "__main__":
    key = jax.random.PRNGKey(0)
    batch, seq, hidden = 2, 8, 32

    x = jax.random.normal(key, (batch, seq, hidden), dtype=jnp.float32)

    # Deterministic parameter init matching nn.Parameter(torch.ones/zeros(ndim)).
    weight = jnp.ones((hidden,), dtype=jnp.float32)
    bias = jnp.zeros((hidden,), dtype=jnp.float32)  # LayerNorm(ndim, bias=True)

    out = jax.block_until_ready(layer_norm(x, weight, bias))
    ref = _reference_layer_norm(x, weight, bias)
    assert out.shape == x.shape and out.dtype == x.dtype
    assert jnp.allclose(out, ref, atol=1e-4, rtol=1e-5), "mismatch vs reference"

    # bias=False path (LayerNorm(ndim, bias=False)).
    out_nb = jax.block_until_ready(layer_norm(x, weight, None))
    ref_nb = _reference_layer_norm(x, weight, None)
    assert jnp.allclose(out_nb, ref_nb, atol=1e-4, rtol=1e-5), "mismatch (no bias)"

    # Ragged row count with an explicit non-dividing tile: exercises the cdiv
    # grid + masked last block.
    x_big = jax.random.normal(key, (3, 37, hidden), dtype=jnp.float32)
    out_big = jax.block_until_ready(layer_norm(x_big, weight, bias, block_rows=32))
    ref_big = _reference_layer_norm(x_big, weight, bias)
    assert jnp.allclose(out_big, ref_big, atol=1e-4, rtol=1e-5), "mismatch (ragged)"

    # Lane-dense hidden (multiple of 128): the intended fast path, with
    # non-trivial deterministic weight/bias.
    h2 = 256
    x_ld = jax.random.normal(key, (4, 16, h2), dtype=jnp.float32)
    w_ld = jax.random.normal(jax.random.PRNGKey(1), (h2,), dtype=jnp.float32)
    b_ld = jax.random.normal(jax.random.PRNGKey(2), (h2,), dtype=jnp.float32)
    out_ld = jax.block_until_ready(layer_norm(x_ld, w_ld, b_ld))
    ref_ld = _reference_layer_norm(x_ld, w_ld, b_ld)
    assert jnp.allclose(out_ld, ref_ld, atol=1e-4, rtol=1e-5), "mismatch (lane-dense)"

    print("KERNEL_OK")
</pallas_src>

<mosaic_0001>
module attributes {stable_mosaic.version = 11 : i64} {
  func.func @_layernorm_bias_kernel(%arg0: i32, %arg1: memref<16x32xf32, #tpu.memory_space<vmem>>, %arg2: memref<1x32xf32, #tpu.memory_space<vmem>>, %arg3: memref<1x32xf32, #tpu.memory_space<vmem>>, %arg4: memref<16x32xf32, #tpu.memory_space<vmem>>) attributes {dimension_semantics = [#tpu.dimension_semantics<parallel>], iteration_bounds = array<i64: 1>, scalar_prefetch = 0 : i64, scratch_operands = 0 : i64, tpu.core_type = #tpu.core_type<tc>, window_params = [{transform_indices = @transform_0, window_bounds = array<i64: 16, 32>}, {pipeline_mode = #tpu.pipeline_mode<synchronous>, transform_indices = @transform_1, window_bounds = array<i64: 1, 32>}, {pipeline_mode = #tpu.pipeline_mode<synchronous>, transform_indices = @transform_2, window_bounds = array<i64: 1, 32>}, {transform_indices = @transform_3, window_bounds = array<i64: 16, 32>}]} {
    %c0 = arith.constant 0 : index
    %c0_0 = arith.constant 0 : index
    %0 = vector.load %arg1[%c0, %c0_0] : memref<16x32xf32, #tpu.memory_space<vmem>>, vector<16x32xf32>
    %cst = arith.constant dense<0.000000e+00> : vector<16xf32>
    %1 = vector.multi_reduction <add>, %0, %cst [1] : vector<16x32xf32> to vector<16xf32>
    %2 = vector.shape_cast %1 : vector<16xf32> to vector<16x1xf32>
    %cst_1 = arith.constant 3.200000e+01 : f32
    %3 = vector.broadcast %cst_1 : f32 to vector<16x1xf32>
    %4 = arith.divf %2, %3 : vector<16x1xf32>
    %5 = arith.mulf %0, %0 : vector<16x32xf32>
    %cst_2 = arith.constant dense<0.000000e+00> : vector<16xf32>
    %6 = vector.multi_reduction <add>, %5, %cst_2 [1] : vector<16x32xf32> to vector<16xf32>
    %7 = vector.shape_cast %6 : vector<16xf32> to vector<16x1xf32>
    %cst_3 = arith.constant 3.200000e+01 : f32
    %8 = vector.broadcast %cst_3 : f32 to vector<16x1xf32>
    %9 = arith.divf %7, %8 : vector<16x1xf32>
    %10 = arith.mulf %4, %4 : vector<16x1xf32>
    %11 = arith.subf %9, %10 : vector<16x1xf32>
    %cst_4 = arith.constant 0.000000e+00 : f32
    %12 = vector.broadcast %cst_4 : f32 to vector<16x1xf32>
    %13 = arith.maximumf %11, %12 : vector<16x1xf32>
    %cst_5 = arith.constant 9.99999974E-6 : f32
    %14 = vector.broadcast %cst_5 : f32 to vector<16x1xf32>
    %15 = arith.addf %13, %14 : vector<16x1xf32>
    %16 = math.rsqrt %15 : vector<16x1xf32>
    %17 = vector.broadcast %4 : vector<16x1xf32> to vector<16x32xf32>
    %18 = arith.subf %0, %17 : vector<16x32xf32>
    %19 = vector.broadcast %16 : vector<16x1xf32> to vector<16x32xf32>
    %20 = arith.mulf %18, %19 : vector<16x32xf32>
    %c0_6 = arith.constant 0 : index
    %c0_7 = arith.constant 0 : index
    %21 = vector.load %arg2[%c0_6, %c0_7] : memref<1x32xf32, #tpu.memory_space<vmem>>, vector<1x32xf32>
    %22 = vector.broadcast %21 : vector<1x32xf32> to vector<16x32xf32>
    %23 = arith.mulf %20, %22 : vector<16x32xf32>
    %c0_8 = arith.constant 0 : index
    %c0_9 = arith.constant 0 : index
    %24 = vector.load %arg3[%c0_8, %c0_9] : memref<1x32xf32, #tpu.memory_space<vmem>>, vector<1x32xf32>
    %25 = vector.broadcast %24 : vector<1x32xf32> to vector<16x32xf32>
    %26 = arith.addf %23, %25 : vector<16x32xf32>
    %c0_10 = arith.constant 0 : index
    %c0_11 = arith.constant 0 : index
    %27 = vector.load %arg4[%c0_10, %c0_11] : memref<16x32xf32, #tpu.memory_space<vmem>>, vector<16x32xf32>
    tpu.vector_store %arg4[%c0_10, %c0_11], %26 {strides = array<i32>} : memref<16x32xf32, #tpu.memory_space<vmem>>, vector<16x32xf32>,
    return
  }
  func.func @transform_0(%arg0: i32) -> (i32, i32) {
    %c0_i32 = arith.constant 0 : i32
    %c0_i32_0 = arith.constant 0 : i32
    return %arg0, %c0_i32 : i32, i32
  }
  func.func @transform_1(%arg0: i32) -> (i32, i32) {
    %c0_i32 = arith.constant 0 : i32
    %c0_i32_0 = arith.constant 0 : i32
    %c0_i32_1 = arith.constant 0 : i32
    return %c0_i32, %c0_i32_0 : i32, i32
  }
  func.func @transform_2(%arg0: i32) -> (i32, i32) {
    %c0_i32 = arith.constant 0 : i32
    %c0_i32_0 = arith.constant 0 : i32
    %c0_i32_1 = arith.constant 0 : i32
    return %c0_i32, %c0_i32_0 : i32, i32
  }
  func.func @transform_3(%arg0: i32) -> (i32, i32) {
    %c0_i32 = arith.constant 0 : i32
    %c0_i32_0 = arith.constant 0 : i32
    return %arg0, %c0_i32 : i32, i32
  }
}

</mosaic_0001>

<llo_original>
// kernel: layer_norm.1
$region0: #{layer_norm.1}
  #allocation0 [shape = 'u32[]', space=smem, size = 0x4, offset = 0x4, fixed_abs, tag = 'smem constant byte address 0x4 - core index']
  #allocation1 [shape = 'u32[144,128]{1,0:T(1,128)}', space=vmem, size = 0x12000, scoped, tag = 'internal scratch']
  %s0 = inlined_call_operand.hbm [shape: f32[16,32], index: 0, kind: input, shape index: {}]
  %s1 = inlined_call_operand.vmem [shape: f32[1,32], index: 1, kind: input, shape index: {}]
  %s2 = inlined_call_operand.vmem [shape: f32[1,32], index: 2, kind: input, shape index: {}]
  %s3 = inlined_call_operand.hbm [shape: f32[16,32], index: 3, kind: output, shape index: {}]
  %s4 = sld [smem:[#allocation0]]
  $region26: #{layer_norm.1} parent=0
    _
  %s6 = ssub.s32 1, %s4
  %s7 = scalar_select 0, %s6, %s4
  $region1: #{layer_norm.1} parent=0
    #allocation2 [shape = 'u8[8192]{0}', space=vmem, size = 0x2000, scoped, tag = 'input window, operand 0, single buffered']
    #allocation3 [shape = 's32[1]{0}', space=sflag, size = 0x4, scoped, tag = 'scoped memory for layer_norm.1']
    #allocation4 [shape = 's32[1]{0}', space=sflag, size = 0x4, scoped, tag = 'scoped memory for layer_norm.1']
    #allocation5 [shape = 'u8[8192]{0}', space=vmem, size = 0x2000, scoped, tag = 'output window, operand 0, single buffered']
    %8 = vsyncpa [#allocation3], 0
    %9 = vsyncpa [#allocation4], 0
    // Predicated region
    $region2: #{layer_norm.1} parent=1 // pred_check
      _
    $region3: #{layer_norm.1} parent=1 // pred_check_branch
      %11 = sbr.rel (0) target = $region5
    $region4: #{layer_norm.1} parent=1 // pred_region
      %s13 = ssub.s32 256, 256
      %14 = vsyncadd [#allocation3], %s13
      %s15 = sshll.u32 [#allocation2], 4
      %s16 = int_to_ptr.vmem [resolvable:$true] %s15
      %21 = dma.hbm_to_vmem [thread:$0]  %s0, 256, %s16, [#allocation3], 128, 128, 8
    $region5: #{layer_norm.1} parent=1 // pred_fallthru
      _
    // Predicated region
    $region6: #{layer_norm.1} parent=1 // pred_check
      _
    $region7: #{layer_norm.1} parent=1 // pred_check_branch
      %23 = sbr.rel (0) target = $region9
    $region8: #{layer_norm.1} parent=1 // pred_region
      _
    $region9: #{layer_norm.1} parent=1 // pred_fallthru
      _
    // Predicated region
    $region10: #{layer_norm.1} parent=1 // pred_check
      _
    $region11: #{layer_norm.1} parent=1 // pred_check_branch
      %25 = sbr.rel (0) target = $region13
    $region12: #{layer_norm.1} parent=1 // pred_region
      _
    $region13: #{layer_norm.1} parent=1 // pred_fallthru
      _
    // Predicated region
    $region14: #{layer_norm.1} parent=1 // pred_check
      _
    $region15: #{layer_norm.1} parent=1 // pred_check_branch
      %27 = sbr.rel (0) target = $region17
    $region16: #{layer_norm.1} parent=1 // pred_region
      %28 = dma.done [#allocation3], 256
    $region17: #{layer_norm.1} parent=1 // pred_fallthru
      _
    %v29 = vld [vmem:[#allocation2] sm:$0xff]
    %v30 = vld [vmem:[#allocation2 + $0x8] sm:$0xff]
    %vm31 = vcmask 261120
    %v32 = vsel %vm31, %v29, 0.0
    %33 = vadd.xlane.f32.xlu0 %v32
    %v34 = vpop.xlane.xlu0 %33
    %v35 = vsel %vm31, %v30, 0.0
    %36 = vadd.xlane.f32.xlu0 %v35
    %v37 = vpop.xlane.xlu0 %36
    %v38 = vrcp.pop 32.0
    %v39 = vmul.f32 %v34, %v38
    %v40 = vmul.f32 %v37, %v38
    %v41 = vmul.f32 %v29, %v29
    %v42 = vmul.f32 %v30, %v30
    %v43 = vsel %vm31, %v41, 0.0
    %44 = vadd.xlane.f32.xlu0 %v43
    %v45 = vpop.xlane.xlu0 %44
    %v46 = vsel %vm31, %v42, 0.0
    %47 = vadd.xlane.f32.xlu0 %v46
    %v48 = vpop.xlane.xlu0 %47
    %v49 = vmul.f32 %v45, %v38
    %v50 = vmul.f32 %v48, %v38
    %v51 = vmul.f32 %v39, %v39
    %v52 = vmul.f32 %v40, %v40
    %v53 = vsub.f32 %v49, %v51
    %v54 = vsub.f32 %v50, %v52
    %v55 = vmax.f32 %v53, 0.0
    %v56 = vmax.f32 %v54, 0.0
    %v57 = vadd.f32 %v55, 1e-05
    %v58 = vadd.f32 %v56, 1e-05
    %v59 = vrsqrt.pop %v57
    %v60 = vrsqrt.pop %v58
    %v61 = vsub.f32 %v29, %v39
    %v62 = vsub.f32 %v30, %v40
    %v63 = vmul.f32 %v61, %v59
    %v64 = vmul.f32 %v62, %v60
    %v65 = vld [vmem:[%s1] sm:$0x1]
    %v67 = vlaneseq
    %v68 = vshrl.u32 %v67, 7
    %v69 = vsub.s32 0, %v68
    %v70 = vrot.slane %v65, %v69
    %v72 = vmul.f32 %v63, %v70
    %v73 = vmul.f32 %v64, %v70
    %v74 = vld [vmem:[%s2] sm:$0x1]
    %v76 = vlaneseq
    %v77 = vshrl.u32 %v76, 7
    %v78 = vsub.s32 0, %v77
    %v79 = vrot.slane %v74, %v78
    %v81 = vadd.f32 %v72, %v79
    %v82 = vadd.f32 %v73, %v79
    %83 = vst.msk [vmem:[#allocation5] sm:$0xff] %vm31, %v81
    %84 = vst.msk [vmem:[#allocation5 + $0x8] sm:$0xff] %vm31, %v82
    // Predicated region
    $region18: #{layer_norm.1} parent=1 // pred_check
      _
    $region19: #{layer_norm.1} parent=1 // pred_check_branch
      %86 = sbr.rel (0) target = $region21
    $region20: #{layer_norm.1} parent=1 // pred_region
      %s88 = ssub.s32 256, 256
      %89 = vsyncadd [#allocation4], %s88
      %s90 = sshll.u32 [#allocation5], 4
      %s91 = int_to_ptr.vmem [resolvable:$true] %s90
      %96 = dma.vmem_to_hbm [thread:$0]  %s91, 256, %s3, [#allocation4], 128, 128, 8
    $region21: #{layer_norm.1} parent=1 // pred_fallthru
      _
    // Predicated region
    $region22: #{layer_norm.1} parent=1 // pred_check
      _
    $region23: #{layer_norm.1} parent=1 // pred_check_branch
      %98 = sbr.rel (0) target = $region25
    $region24: #{layer_norm.1} parent=1 // pred_region
      %99 = dma.done [#allocation4], 256
    $region25: #{layer_norm.1} parent=1 // pred_fallthru
      _
    %100 = vsyncpa [#allocation3], 1
    %101 = vsyncpa [#allocation4], 1

</llo_original>
